<compile_context>
chip_gen: v5e
topology: v5e:2x2
jax: 0.10.0
libtpu: 0.0.40
codegen_flags: <defaults>
</compile_context>

<pallas_src>
import functools

import jax
import jax.numpy as jnp
import numpy as np
from jax import lax
from jax.experimental import pallas as pl
from jax.experimental.pallas import tpu as pltpu

_PD_EPS = 1e-6  # nn.PairwiseDistance default eps (added elementwise before the norm)


def _eval_loss_kernel(target_ref, emb_ref, w_ih_ref, w_hh_ref, b_ref, hidden_ref,
                      loss_ref, out_ref,
                      bias_ref, m_ref, l_ref, picked_ref, *, temp, tm):
    i = pl.program_id(0)

    @pl.when(i == 0)
    def _init():
        # Shared across every row: h_proj = hidden @ W_hh (bf16 MXU, f32 acc).
        h_proj = jnp.dot(hidden_ref[...].astype(jnp.bfloat16), w_hh_ref[...],
                         preferred_element_type=jnp.float32)          # (1, nhid)
        bias_ref[...] = h_proj + b_ref[...]
        m_ref[...] = jnp.full((1, 1), -jnp.inf, jnp.float32)
        l_ref[...] = jnp.zeros((1, 1), jnp.float32)
        picked_ref[...] = jnp.zeros((1, 1), jnp.float32)

    # Per-tile model output: tanh(emb_tile @ W_ih + bias) -- bf16 MXU, f32 rest.
    pre = jnp.dot(emb_ref[...], w_ih_ref[...],
                  preferred_element_type=jnp.float32)                 # (tm, nhid)
    output = jnp.tanh(pre + bias_ref[...])                            # f32
    out_ref[...] = output.astype(out_ref.dtype)

    # dist_i = -temp * || hidden - output_i + eps ||^2   (per-row XLU reduce)
    diff = hidden_ref[...] - output + _PD_EPS                         # (tm, nhid)
    dist = -temp * jnp.sum(diff * diff, axis=-1, keepdims=True)       # (tm, 1)

    # Online logsumexp across tiles.
    tile_max = jnp.max(dist, axis=0, keepdims=True)                   # (1, 1)
    m_prev = m_ref[...]
    m_new = jnp.maximum(m_prev, tile_max)
    l_ref[...] = (l_ref[...] * jnp.exp(m_prev - m_new)
                  + jnp.sum(jnp.exp(dist - m_new), axis=0, keepdims=True))
    m_ref[...] = m_new

    # Grab dist[target] only on the tile that contains it.
    tgt = target_ref[0]
    row0 = i * tm

    @pl.when(jnp.logical_and(tgt >= row0, tgt < row0 + tm))
    def _pick():
        ids = lax.broadcasted_iota(jnp.int32, dist.shape, 0)
        picked_ref[...] = jnp.sum(jnp.where(ids == tgt - row0, dist, 0.0),
                                  axis=0, keepdims=True)

    @pl.when(i == pl.num_programs(0) - 1)
    def _finalize():
        # CrossEntropy over a single row: logsumexp(dist) - dist[target]
        lse = m_ref[...] + jnp.log(l_ref[...])
        loss_ref[...] = (lse - picked_ref[...]).astype(loss_ref.dtype)


def simple_evaluation_loss(target, emb, w_ih, w_hh, b, hidden, *, temp, tm=256):
    ntokens, nhid = emb.shape
    tm = min(tm, ntokens)
    assert ntokens % tm == 0, "ntokens must be a multiple of the row tile"
    grid = (ntokens // tm,)

    # bf16 on the MXU operands (halves emb HBM traffic; f32 accumulate in-kernel).
    emb_bf = emb.astype(jnp.bfloat16)
    w_ih_bf = w_ih.astype(jnp.bfloat16)
    w_hh_bf = w_hh.astype(jnp.bfloat16)

    kernel = functools.partial(_eval_loss_kernel, temp=temp, tm=tm)
    loss, output = pl.pallas_call(
        kernel,
        out_shape=(
            jax.ShapeDtypeStruct((1, 1), jnp.float32),                # scalar loss
            jax.ShapeDtypeStruct((ntokens, nhid), jnp.float32),       # model output
        ),
        grid_spec=pltpu.PrefetchScalarGridSpec(
            num_scalar_prefetch=1,                                    # target -> SMEM
            grid=grid,
            in_specs=[
                pl.BlockSpec((tm, nhid), lambda i, tgt: (i, 0)),      # emb tile (pipelined)
                pl.BlockSpec((nhid, nhid), lambda i, tgt: (0, 0)),    # W_ih (resident)
                pl.BlockSpec((nhid, nhid), lambda i, tgt: (0, 0)),    # W_hh (resident)
                pl.BlockSpec((1, nhid), lambda i, tgt: (0, 0)),       # b (resident)
                pl.BlockSpec((1, nhid), lambda i, tgt: (0, 0)),       # hidden (resident)
            ],
            out_specs=(
                pl.BlockSpec((1, 1), lambda i, tgt: (0, 0)),          # loss (resident)
                pl.BlockSpec((tm, nhid), lambda i, tgt: (i, 0)),      # output tile
            ),
            scratch_shapes=[
                pltpu.VMEM((1, nhid), jnp.float32),   # bias = hidden@W_hh + b
                pltpu.VMEM((1, 1), jnp.float32),      # running max
                pltpu.VMEM((1, 1), jnp.float32),      # running sum-exp
                pltpu.VMEM((1, 1), jnp.float32),      # picked target logit
            ]),
        compiler_params=pltpu.CompilerParams(
            dimension_semantics=("arbitrary",),       # accumulator-carried axis
            vmem_limit_bytes=64 << 20),
    )(target, emb_bf, w_ih_bf, w_hh_bf, b, hidden)
    return loss[0, 0], output


def _reference(target, emb, w_ih, w_hh, b, hidden, *, temp):
    output = jnp.tanh(emb @ w_ih + hidden @ w_hh + b)
    diff = hidden - output + _PD_EPS
    dist = -temp * jnp.sum(diff * diff, axis=-1)
    lse = jax.scipy.special.logsumexp(dist)
    loss = lse - dist[target[0]]
    return loss, output


if __name__ == "__main__":
    ntokens, nhid = 512, 128       # 4 row-tiles of 128 -> exercises the pipeline
    temp = 0.5

    key = jax.random.PRNGKey(0)
    k_emb, k_wih, k_whh, k_b, k_h = jax.random.split(key, 5)

    # words = [0..ntokens-1]  =>  emb[words] is the full embedding table (glue).
    emb = jax.random.normal(k_emb, (ntokens, nhid), jnp.float32) * 0.1
    w_ih = jax.random.normal(k_wih, (nhid, nhid), jnp.float32) * 0.1
    w_hh = jax.random.normal(k_whh, (nhid, nhid), jnp.float32) * 0.1
    b = jax.random.normal(k_b, (1, nhid), jnp.float32) * 0.1
    hidden = jax.random.normal(k_h, (1, nhid), jnp.float32)     # RNN hidden state
    target = jnp.array([371], dtype=jnp.int32)                  # target token index

    loss, output = jax.jit(
        functools.partial(simple_evaluation_loss, temp=temp, tm=128))(
            target, emb, w_ih, w_hh, b, hidden)
    jax.block_until_ready((loss, output))

    ref_loss, ref_out = _reference(target, emb, w_ih, w_hh, b, hidden, temp=temp)
    assert np.allclose(np.asarray(loss), np.asarray(ref_loss), rtol=5e-2, atol=5e-2)
    assert np.allclose(np.asarray(output), np.asarray(ref_out), rtol=5e-2, atol=5e-2)

    print("KERNEL_OK")
</pallas_src>

<mosaic_0001>
module attributes {stable_mosaic.version = 11 : i64} {
  func.func @_eval_loss_kernel(%arg0: i32, %arg1: memref<1xi32, #tpu.memory_space<smem>>, %arg2: memref<128x128xbf16, #tpu.memory_space<vmem>>, %arg3: memref<128x128xbf16, #tpu.memory_space<vmem>>, %arg4: memref<128x128xbf16, #tpu.memory_space<vmem>>, %arg5: memref<1x128xf32, #tpu.memory_space<vmem>>, %arg6: memref<1x128xf32, #tpu.memory_space<vmem>>, %arg7: memref<1x1xf32, #tpu.memory_space<vmem>>, %arg8: memref<128x128xf32, #tpu.memory_space<vmem>>, %arg9: memref<1x128xf32, #tpu.memory_space<vmem>>, %arg10: memref<1x1xf32, #tpu.memory_space<vmem>>, %arg11: memref<1x1xf32, #tpu.memory_space<vmem>>, %arg12: memref<1x1xf32, #tpu.memory_space<vmem>>) attributes {dimension_semantics = [#tpu.dimension_semantics<arbitrary>], iteration_bounds = array<i64: 4>, scalar_prefetch = 1 : i64, scratch_operands = 4 : i64, tpu.core_type = #tpu.core_type<tc>, window_params = [{transform_indices = @transform_0, window_bounds = array<i64: 128, 128>}, {pipeline_mode = #tpu.pipeline_mode<synchronous>, transform_indices = @transform_1, window_bounds = array<i64: 128, 128>}, {pipeline_mode = #tpu.pipeline_mode<synchronous>, transform_indices = @transform_2, window_bounds = array<i64: 128, 128>}, {pipeline_mode = #tpu.pipeline_mode<synchronous>, transform_indices = @transform_3, window_bounds = array<i64: 1, 128>}, {pipeline_mode = #tpu.pipeline_mode<synchronous>, transform_indices = @transform_4, window_bounds = array<i64: 1, 128>}, {pipeline_mode = #tpu.pipeline_mode<synchronous>, transform_indices = @transform_5, window_bounds = array<i64: 1, 1>}, {transform_indices = @transform_6, window_bounds = array<i64: 128, 128>}]} {
    %c0_i32 = arith.constant 0 : i32
    %0 = arith.cmpi eq, %arg0, %c0_i32 : i32
    %1 = arith.extui %0 : i1 to i32
    %c0_i32_0 = arith.constant 0 : i32
    %2 = arith.cmpi ne, %1, %c0_i32_0 : i32
    scf.if %2 {
      %c0_27 = arith.constant 0 : index
      %c0_28 = arith.constant 0 : index
      %48 = vector.load %arg6[%c0_27, %c0_28] : memref<1x128xf32, #tpu.memory_space<vmem>>, vector<1x128xf32>
      %49 = arith.truncf %48 : vector<1x128xf32> to vector<1x128xbf16>
      %c0_29 = arith.constant 0 : index
      %c0_30 = arith.constant 0 : index
      %50 = vector.load %arg4[%c0_29, %c0_30] : memref<128x128xbf16, #tpu.memory_space<vmem>>, vector<128x128xbf16>
      %cst_31 = arith.constant dense<0.000000e+00> : vector<1x128xf32>
      %51 = tpu.matmul %49, %50, %cst_31 {dimension_numbers = #tpu.dot_dimension_numbers<[1], [0], [0], [1], [0, 0, 1, 1], [], []>} : vector<1x128xbf16>, vector<128x128xbf16>, vector<1x128xf32> -> vector<1x128xf32>
      %c0_32 = arith.constant 0 : index
      %c0_33 = arith.constant 0 : index
      %52 = vector.load %arg5[%c0_32, %c0_33] : memref<1x128xf32, #tpu.memory_space<vmem>>, vector<1x128xf32>
      %53 = arith.addf %51, %52 : vector<1x128xf32>
      %c0_34 = arith.constant 0 : index
      %c0_35 = arith.constant 0 : index
      %54 = vector.load %arg9[%c0_34, %c0_35] : memref<1x128xf32, #tpu.memory_space<vmem>>, vector<1x128xf32>
      tpu.vector_store %arg9[%c0_34, %c0_35], %53 {strides = array<i32>} : memref<1x128xf32, #tpu.memory_space<vmem>>, vector<1x128xf32>,
      %cst_36 = arith.constant 0xFF800000 : f32
      %55 = vector.broadcast %cst_36 : f32 to vector<1x1xf32>
      %c0_37 = arith.constant 0 : index
      %c0_38 = arith.constant 0 : index
      %56 = vector.load %arg10[%c0_37, %c0_38] : memref<1x1xf32, #tpu.memory_space<vmem>>, vector<1x1xf32>
      tpu.vector_store %arg10[%c0_37, %c0_38], %55 {strides = array<i32>} : memref<1x1xf32, #tpu.memory_space<vmem>>, vector<1x1xf32>,
      %cst_39 = arith.constant 0.000000e+00 : f32
      %57 = vector.broadcast %cst_39 : f32 to vector<1x1xf32>
      %c0_40 = arith.constant 0 : index
      %c0_41 = arith.constant 0 : index
      %58 = vector.load %arg11[%c0_40, %c0_41] : memref<1x1xf32, #tpu.memory_space<vmem>>, vector<1x1xf32>
      tpu.vector_store %arg11[%c0_40, %c0_41], %57 {strides = array<i32>} : memref<1x1xf32, #tpu.memory_space<vmem>>, vector<1x1xf32>,
      %cst_42 = arith.constant 0.000000e+00 : f32
      %59 = vector.broadcast %cst_42 : f32 to vector<1x1xf32>
      %c0_43 = arith.constant 0 : index
      %c0_44 = arith.constant 0 : index
      %60 = vector.load %arg12[%c0_43, %c0_44] : memref<1x1xf32, #tpu.memory_space<vmem>>, vector<1x1xf32>
      tpu.vector_store %arg12[%c0_43, %c0_44], %59 {strides = array<i32>} : memref<1x1xf32, #tpu.memory_space<vmem>>, vector<1x1xf32>,
    } else {
    }
    %c0 = arith.constant 0 : index
    %c0_1 = arith.constant 0 : index
    %3 = vector.load %arg2[%c0, %c0_1] : memref<128x128xbf16, #tpu.memory_space<vmem>>, vector<128x128xbf16>
    %c0_2 = arith.constant 0 : index
    %c0_3 = arith.constant 0 : index
    %4 = vector.load %arg3[%c0_2, %c0_3] : memref<128x128xbf16, #tpu.memory_space<vmem>>, vector<128x128xbf16>
    %cst = arith.constant dense<0.000000e+00> : vector<128x128xf32>
    %5 = tpu.matmul %3, %4, %cst {dimension_numbers = #tpu.dot_dimension_numbers<[1], [0], [0], [1], [0, 0, 1, 1], [], []>} : vector<128x128xbf16>, vector<128x128xbf16>, vector<128x128xf32> -> vector<128x128xf32>
    %c0_4 = arith.constant 0 : index
    %c0_5 = arith.constant 0 : index
    %6 = vector.load %arg9[%c0_4, %c0_5] : memref<1x128xf32, #tpu.memory_space<vmem>>, vector<1x128xf32>
    %7 = vector.broadcast %6 : vector<1x128xf32> to vector<128x128xf32>
    %8 = arith.addf %5, %7 : vector<128x128xf32>
    %9 = math.tanh %8 : vector<128x128xf32>
    %c0_6 = arith.constant 0 : index
    %c0_7 = arith.constant 0 : index
    %10 = vector.load %arg8[%c0_6, %c0_7] : memref<128x128xf32, #tpu.memory_space<vmem>>, vector<128x128xf32>
    tpu.vector_store %arg8[%c0_6, %c0_7], %9 {strides = array<i32>} : memref<128x128xf32, #tpu.memory_space<vmem>>, vector<128x128xf32>,
    %c0_8 = arith.constant 0 : index
    %c0_9 = arith.constant 0 : index
    %11 = vector.load %arg6[%c0_8, %c0_9] : memref<1x128xf32, #tpu.memory_space<vmem>>, vector<1x128xf32>
    %12 = vector.broadcast %11 : vector<1x128xf32> to vector<128x128xf32>
    %13 = arith.subf %12, %9 : vector<128x128xf32>
    %cst_10 = arith.constant 9.99999997E-7 : f32
    %14 = vector.broadcast %cst_10 : f32 to vector<128x128xf32>
    %15 = arith.addf %13, %14 : vector<128x128xf32>
    %16 = arith.mulf %15, %15 : vector<128x128xf32>
    %cst_11 = arith.constant dense<0.000000e+00> : vector<128xf32>
    %17 = vector.multi_reduction <add>, %16, %cst_11 [1] : vector<128x128xf32> to vector<128xf32>
    %18 = vector.shape_cast %17 : vector<128xf32> to vector<128x1xf32>
    %cst_12 = arith.constant -5.000000e-01 : f32
    %19 = vector.broadcast %cst_12 : f32 to vector<128x1xf32>
    %20 = arith.mulf %19, %18 : vector<128x1xf32>
    %cst_13 = arith.constant dense<0xFF800000> : vector<1xf32>
    %21 = vector.multi_reduction <maximumf>, %20, %cst_13 [0] : vector<128x1xf32> to vector<1xf32>
    %22 = vector.shape_cast %21 : vector<1xf32> to vector<1x1xf32>
    %c0_14 = arith.constant 0 : index
    %c0_15 = arith.constant 0 : index
    %23 = vector.load %arg10[%c0_14, %c0_15] : memref<1x1xf32, #tpu.memory_space<vmem>>, vector<1x1xf32>
    %24 = arith.maximumf %23, %22 : vector<1x1xf32>
    %c0_16 = arith.constant 0 : index
    %c0_17 = arith.constant 0 : index
    %25 = vector.load %arg11[%c0_16, %c0_17] : memref<1x1xf32, #tpu.memory_space<vmem>>, vector<1x1xf32>
    %26 = arith.subf %23, %24 : vector<1x1xf32>
    %27 = math.exp %26 : vector<1x1xf32>
    %28 = arith.mulf %25, %27 : vector<1x1xf32>
    %29 = vector.broadcast %24 : vector<1x1xf32> to vector<128x1xf32>
    %30 = arith.subf %20, %29 : vector<128x1xf32>
    %31 = math.exp %30 : vector<128x1xf32>
    %cst_18 = arith.constant dense<0.000000e+00> : vector<1xf32>
    %32 = vector.multi_reduction <add>, %31, %cst_18 [0] : vector<128x1xf32> to vector<1xf32>
    %33 = vector.shape_cast %32 : vector<1xf32> to vector<1x1xf32>
    %34 = arith.addf %28, %33 : vector<1x1xf32>
    %c0_19 = arith.constant 0 : index
    %c0_20 = arith.constant 0 : index
    %35 = vector.load %arg11[%c0_19, %c0_20] : memref<1x1xf32, #tpu.memory_space<vmem>>, vector<1x1xf32>
    tpu.vector_store %arg11[%c0_19, %c0_20], %34 {strides = array<i32>} : memref<1x1xf32, #tpu.memory_space<vmem>>, vector<1x1xf32>,
    %c0_21 = arith.constant 0 : index
    %c0_22 = arith.constant 0 : index
    %36 = vector.load %arg10[%c0_21, %c0_22] : memref<1x1xf32, #tpu.memory_space<vmem>>, vector<1x1xf32>
    tpu.vector_store %arg10[%c0_21, %c0_22], %24 {strides = array<i32>} : memref<1x1xf32, #tpu.memory_space<vmem>>, vector<1x1xf32>,
    %c0_23 = arith.constant 0 : index
    %37 = memref.load %arg1[%c0_23] : memref<1xi32, #tpu.memory_space<smem>>
    %c128_i32 = arith.constant 128 : i32
    %38 = arith.muli %arg0, %c128_i32 : i32
    %39 = arith.cmpi sge, %37, %38 : i32
    %c128_i32_24 = arith.constant 128 : i32
    %40 = arith.addi %38, %c128_i32_24 : i32
    %41 = arith.cmpi slt, %37, %40 : i32
    %42 = arith.andi %39, %41 : i1
    %43 = arith.extui %42 : i1 to i32
    %c0_i32_25 = arith.constant 0 : i32
    %44 = arith.cmpi ne, %43, %c0_i32_25 : i32
    scf.if %44 {
      %48 = tpu.iota {dimensions = array<i32: 0>} : vector<128x1xi32>
      %49 = arith.subi %37, %38 : i32
      %50 = vector.broadcast %49 : i32 to vector<128x1xi32>
      %51 = arith.cmpi eq, %48, %50 : vector<128x1xi32>
      %cst_27 = arith.constant 0.000000e+00 : f32
      %52 = vector.broadcast %cst_27 : f32 to vector<128x1xf32>
      %53 = arith.select %51, %20, %52 : vector<128x1xi1>, vector<128x1xf32>
      %cst_28 = arith.constant dense<0.000000e+00> : vector<1xf32>
      %54 = vector.multi_reduction <add>, %53, %cst_28 [0] : vector<128x1xf32> to vector<1xf32>
      %55 = vector.shape_cast %54 : vector<1xf32> to vector<1x1xf32>
      %c0_29 = arith.constant 0 : index
      %c0_30 = arith.constant 0 : index
      %56 = vector.load %arg12[%c0_29, %c0_30] : memref<1x1xf32, #tpu.memory_space<vmem>>, vector<1x1xf32>
      tpu.vector_store %arg12[%c0_29, %c0_30], %55 {strides = array<i32>} : memref<1x1xf32, #tpu.memory_space<vmem>>, vector<1x1xf32>,
    } else {
    }
    %c3_i32 = arith.constant 3 : i32
    %45 = arith.cmpi eq, %arg0, %c3_i32 : i32
    %46 = arith.extui %45 : i1 to i32
    %c0_i32_26 = arith.constant 0 : i32
    %47 = arith.cmpi ne, %46, %c0_i32_26 : i32
    scf.if %47 {
      %c0_27 = arith.constant 0 : index
      %c0_28 = arith.constant 0 : index
      %48 = vector.load %arg10[%c0_27, %c0_28] : memref<1x1xf32, #tpu.memory_space<vmem>>, vector<1x1xf32>
      %c0_29 = arith.constant 0 : index
      %c0_30 = arith.constant 0 : index
      %49 = vector.load %arg11[%c0_29, %c0_30] : memref<1x1xf32, #tpu.memory_space<vmem>>, vector<1x1xf32>
      %50 = math.log %49 : vector<1x1xf32>
      %51 = arith.addf %48, %50 : vector<1x1xf32>
      %c0_31 = arith.constant 0 : index
      %c0_32 = arith.constant 0 : index
      %52 = vector.load %arg12[%c0_31, %c0_32] : memref<1x1xf32, #tpu.memory_space<vmem>>, vector<1x1xf32>
      %53 = arith.subf %51, %52 : vector<1x1xf32>
      %c0_33 = arith.constant 0 : index
      %c0_34 = arith.constant 0 : index
      %54 = vector.load %arg7[%c0_33, %c0_34] : memref<1x1xf32, #tpu.memory_space<vmem>>, vector<1x1xf32>
      tpu.vector_store %arg7[%c0_33, %c0_34], %53 {strides = array<i32>} : memref<1x1xf32, #tpu.memory_space<vmem>>, vector<1x1xf32>,
    } else {
    }
    return
  }
  func.func @transform_0(%arg0: i32, %arg1: memref<1xi32, #tpu.memory_space<smem>>) -> (i32, i32) {
    %c0_i32 = arith.constant 0 : i32
    %c0_i32_0 = arith.constant 0 : i32
    return %arg0, %c0_i32 : i32, i32
  }
  func.func @transform_1(%arg0: i32, %arg1: memref<1xi32, #tpu.memory_space<smem>>) -> (i32, i32) {
    %c0_i32 = arith.constant 0 : i32
    %c0_i32_0 = arith.constant 0 : i32
    %c0_i32_1 = arith.constant 0 : i32
    return %c0_i32, %c0_i32_0 : i32, i32
  }
  func.func @transform_2(%arg0: i32, %arg1: memref<1xi32, #tpu.memory_space<smem>>) -> (i32, i32) {
    %c0_i32 = arith.constant 0 : i32
    %c0_i32_0 = arith.constant 0 : i32
    %c0_i32_1 = arith.constant 0 : i32
    return %c0_i32, %c0_i32_0 : i32, i32
  }
  func.func @transform_3(%arg0: i32, %arg1: memref<1xi32, #tpu.memory_space<smem>>) -> (i32, i32) {
    %c0_i32 = arith.constant 0 : i32
    %c0_i32_0 = arith.constant 0 : i32
    %c0_i32_1 = arith.constant 0 : i32
    return %c0_i32, %c0_i32_0 : i32, i32
  }
  func.func @transform_4(%arg0: i32, %arg1: memref<1xi32, #tpu.memory_space<smem>>) -> (i32, i32) {
    %c0_i32 = arith.constant 0 : i32
    %c0_i32_0 = arith.constant 0 : i32
    %c0_i32_1 = arith.constant 0 : i32
    return %c0_i32, %c0_i32_0 : i32, i32
  }
  func.func @transform_5(%arg0: i32, %arg1: memref<1xi32, #tpu.memory_space<smem>>) -> (i32, i32) {
    %c0_i32 = arith.constant 0 : i32
    %c0_i32_0 = arith.constant 0 : i32
    %c0_i32_1 = arith.constant 0 : i32
    return %c0_i32, %c0_i32_0 : i32, i32
  }
  func.func @transform_6(%arg0: i32, %arg1: memref<1xi32, #tpu.memory_space<smem>>) -> (i32, i32) {
    %c0_i32 = arith.constant 0 : i32
    %c0_i32_0 = arith.constant 0 : i32
    return %arg0, %c0_i32 : i32, i32
  }
}

</mosaic_0001>

<llo_original>
// kernel: simple_evaluation_loss.1
$region0: #{simple_evaluation_loss.1}
  #allocation0 [shape = 'u32[]', space=smem, size = 0x4, offset = 0x4, fixed_abs, tag = 'smem constant byte address 0x4 - core index']
  #allocation1 [shape = 'u32[72,128]{1,0:T(1,128)}', space=vmem, size = 0x9000, scoped, tag = 'internal scratch']
  #allocation2 [shape = 'f32[1,128]{1,0:T(1,128)}', space=vmem, size = 0x200, scoped, tag = 'scratch operand']
  #allocation3 [shape = 'f32[1,1]{1,0:T(1,128)}', space=vmem, size = 0x200, scoped, tag = 'scratch operand']
  #allocation4 [shape = 'f32[1,1]{1,0:T(1,128)}', space=vmem, size = 0x200, scoped, tag = 'scratch operand']
  #allocation5 [shape = 'f32[1,1]{1,0:T(1,128)}', space=vmem, size = 0x200, scoped, tag = 'scratch operand']
  #allocation6 [shape = 's32[1]{0}', space=sflag, size = 0x4, scoped, tag = 'scoped memory for simple_evaluation_loss.1']
  #allocation7 [shape = 's32[1]{0:T(128)S(6)}', space=smem, size = 0x200, scoped, tag = 'prefetched SMEM operand 0']
  %s0 = inlined_call_operand.<no memory space> [shape: s32[1], index: 0, kind: input, shape index: {}]
  %s1 = inlined_call_operand.vmem [shape: bf16[512,128], index: 1, kind: input, shape index: {}]
  %s2 = inlined_call_operand.vmem [shape: bf16[128,128], index: 2, kind: input, shape index: {}]
  %s3 = inlined_call_operand.vmem [shape: bf16[128,128], index: 3, kind: input, shape index: {}]
  %s4 = inlined_call_operand.vmem [shape: f32[1,128], index: 4, kind: input, shape index: {}]
  %s5 = inlined_call_operand.vmem [shape: f32[1,128], index: 5, kind: input, shape index: {}]
  %s6 = inlined_call_operand.hbm [shape: f32[1,1], index: 6, kind: output, shape index: {0}]
  %s7 = inlined_call_operand.hbm [shape: f32[512,128], index: 7, kind: output, shape index: {1}]
  %8 = xla_tuple %s6, %s7
  %s9 = sld [smem:[#allocation0]]
  $region73: #{simple_evaluation_loss.1} parent=0
    _
  %s11 = ssub.s32 1, %s9
  %s12 = scalar_select 0, %s11, %s9
  %13 = sst [smem:[#allocation7]] %s0
  $region1: #{simple_evaluation_loss.1} parent=0
    #allocation8 [shape = 'u8[512]{0}', space=vmem, size = 0x400, scoped, tag = 'output window, operand 0, single buffered']
    #allocation9 [shape = 's32[2]{0}', space=sflag, size = 0x8, scoped, tag = 'scoped memory for simple_evaluation_loss.1']
    #allocation10 [shape = 'u8[131072]{0}', space=vmem, size = 0x20000, scoped, tag = 'output window, operand 1']
    #allocation11 [shape = 's32[2]{0}', space=sflag, size = 0x8, scoped, tag = 'scoped memory for simple_evaluation_loss.1']
    %14 = vsyncpa [#allocation9], 0
    %15 = vsyncpa [#allocation11], 0
    %s16 = scalar_lea.sflag [#allocation11], 1
    %17 = vsyncpa %s16, 0
    loop: start=0, step=1, limit=6
    $region2: #{simple_evaluation_loss.1} parent=1 // loop_pre_header
      _
    $region3: #{simple_evaluation_loss.1} parent=1 // loop_header
      %s19 = sphi 0, %s23
      %p20 = scmp.ge.s32.totalorder %s19, 6
      %s29 = sphi 0, %s31
      %s32 = sphi 0, %s29
      %s33 = sphi 0, %s32
      %s49 = sphi 0, %s33
      %s53 = sphi 0, %s53
      %s55 = sphi 0, %s53
      %s56 = sphi 0, %s55
      %s70 = sphi 0, %s56
      %s74 = sphi 0, %s74
      %s76 = sphi 0, %s74
      %s77 = sphi 0, %s76
      %s91 = sphi 0, %s77
      %s95 = sphi 0, %s95
      %s97 = sphi 0, %s95
      %s98 = sphi 0, %s97
      %s112 = sphi 0, %s98
      %s116 = sphi 0, %s116
      %s118 = sphi 0, %s116
      %s119 = sphi 0, %s118
      %s133 = sphi 0, %s119
      %s137 = sphi 0, %s137
      %s139 = sphi 0, %s137
      %s140 = sphi 0, %s139
      %s154 = sphi 0, %s140
      %s160 = sphi 0, %s162
      %s163 = sphi 0, %s160
      %s164 = sphi 0, %s163
      %s180 = sphi 0, %s164
    $region4: #{simple_evaluation_loss.1} parent=1 // loop_header_branch
      %22 = sbr.rel (%p20) target = $region8
    $region5: #{simple_evaluation_loss.1} parent=1 // loop_body
      %s24 = ssub.s32 %s19, 1
      %s25 = ssub.s32 %s19, 2
      %s26 = sadd.s32 %s19, 1
      %s27 = ssub.s32 %s19, %s26
      %p28 = scmp.eq.s32.totalorder %s27, 0
      %s30 = sadd.s32 %s29, 1
      %s31 = scalar_select %p28, %s29, %s30
      %p34 = pneg %p28
      %p35 = scmp.eq.s32.totalorder %s19, 3
      %p36 = por %p34, %p35
      %p37 = scmp.ne.s32.totalorder %s29, %s32
      %p38 = scmp.eq.s32.totalorder %s19, 0
      %p39 = por %p37, %p38
      %p40 = scmp.ne.s32.totalorder %s29, %s32
      %p41 = scmp.eq.s32.totalorder %s24, 3
      %p42 = por %p40, %p41
      %p43 = scmp.ne.s32.totalorder %s32, %s33
      %p44 = scmp.eq.s32.totalorder %s24, 0
      %p45 = por %p43, %p44
      %p46 = scmp.ne.s32.totalorder %s32, %s33
      %p47 = scmp.eq.s32.totalorder %s25, 3
      %p48 = por %p46, %p47
      %p50 = scmp.ne.s32.totalorder %s33, %s49
      %p51 = scmp.eq.s32.totalorder %s25, 0
      %p52 = por %p50, %p51
      %s54 = sadd.s32 %s53, 1
      %p57 = scmp.eq.s32.totalorder %s19, 3
      %p58 = scmp.ne.s32.totalorder %s53, %s55
      %p59 = scmp.eq.s32.totalorder %s19, 0
      %p60 = por %p58, %p59
      %p61 = scmp.ne.s32.totalorder %s53, %s55
      %p62 = scmp.eq.s32.totalorder %s24, 3
      %p63 = por %p61, %p62
      %p64 = scmp.ne.s32.totalorder %s55, %s56
      %p65 = scmp.eq.s32.totalorder %s24, 0
      %p66 = por %p64, %p65
      %p67 = scmp.ne.s32.totalorder %s55, %s56
      %p68 = scmp.eq.s32.totalorder %s25, 3
      %p69 = por %p67, %p68
      %p71 = scmp.ne.s32.totalorder %s56, %s70
      %p72 = scmp.eq.s32.totalorder %s25, 0
      %p73 = por %p71, %p72
      %s75 = sadd.s32 %s74, 1
      %p78 = scmp.eq.s32.totalorder %s19, 3
      %p79 = scmp.ne.s32.totalorder %s74, %s76
      %p80 = scmp.eq.s32.totalorder %s19, 0
      %p81 = por %p79, %p80
      %p82 = scmp.ne.s32.totalorder %s74, %s76
      %p83 = scmp.eq.s32.totalorder %s24, 3
      %p84 = por %p82, %p83
      %p85 = scmp.ne.s32.totalorder %s76, %s77
      %p86 = scmp.eq.s32.totalorder %s24, 0
      %p87 = por %p85, %p86
      %p88 = scmp.ne.s32.totalorder %s76, %s77
      %p89 = scmp.eq.s32.totalorder %s25, 3
      %p90 = por %p88, %p89
      %p92 = scmp.ne.s32.totalorder %s77, %s91
      %p93 = scmp.eq.s32.totalorder %s25, 0
      %p94 = por %p92, %p93
      %s96 = sadd.s32 %s95, 1
      %p99 = scmp.eq.s32.totalorder %s19, 3
      %p100 = scmp.ne.s32.totalorder %s95, %s97
      %p101 = scmp.eq.s32.totalorder %s19, 0
      %p102 = por %p100, %p101
      %p103 = scmp.ne.s32.totalorder %s95, %s97
      %p104 = scmp.eq.s32.totalorder %s24, 3
      %p105 = por %p103, %p104
      %p106 = scmp.ne.s32.totalorder %s97, %s98
      %p107 = scmp.eq.s32.totalorder %s24, 0
      %p108 = por %p106, %p107
      %p109 = scmp.ne.s32.totalorder %s97, %s98
      %p110 = scmp.eq.s32.totalorder %s25, 3
      %p111 = por %p109, %p110
      %p113 = scmp.ne.s32.totalorder %s98, %s112
      %p114 = scmp.eq.s32.totalorder %s25, 0
      %p115 = por %p113, %p114
      %s117 = sadd.s32 %s116, 1
      %p120 = scmp.eq.s32.totalorder %s19, 3
      %p121 = scmp.ne.s32.totalorder %s116, %s118
      %p122 = scmp.eq.s32.totalorder %s19, 0
      %p123 = por %p121, %p122
      %p124 = scmp.ne.s32.totalorder %s116, %s118
      %p125 = scmp.eq.s32.totalorder %s24, 3
      %p126 = por %p124, %p125
      %p127 = scmp.ne.s32.totalorder %s118, %s119
      %p128 = scmp.eq.s32.totalorder %s24, 0
      %p129 = por %p127, %p128
      %p130 = scmp.ne.s32.totalorder %s118, %s119
      %p131 = scmp.eq.s32.totalorder %s25, 3
      %p132 = por %p130, %p131
      %p134 = scmp.ne.s32.totalorder %s119, %s133
      %p135 = scmp.eq.s32.totalorder %s25, 0
      %p136 = por %p134, %p135
      %s138 = sadd.s32 %s137, 1
      %p141 = scmp.eq.s32.totalorder %s19, 3
      %p142 = scmp.ne.s32.totalorder %s137, %s139
      %p143 = scmp.eq.s32.totalorder %s19, 0
      %p144 = por %p142, %p143
      %p145 = scmp.ne.s32.totalorder %s137, %s139
      %p146 = scmp.eq.s32.totalorder %s24, 3
      %p147 = por %p145, %p146
      %p148 = scmp.ne.s32.totalorder %s139, %s140
      %p149 = scmp.eq.s32.totalorder %s24, 0
      %p150 = por %p148, %p149
      %p151 = scmp.ne.s32.totalorder %s139, %s140
      %p152 = scmp.eq.s32.totalorder %s25, 3
      %p153 = por %p151, %p152
      %p155 = scmp.ne.s32.totalorder %s140, %s154
      %p156 = scmp.eq.s32.totalorder %s25, 0
      %p157 = por %p155, %p156
      %s158 = ssub.s32 %s19, %s26
      %p159 = scmp.eq.s32.totalorder %s158, 0
      %s161 = sadd.s32 %s160, 1
      %s162 = scalar_select %p159, %s160, %s161
      %p165 = pneg %p159
      %p166 = scmp.eq.s32.totalorder %s19, 3
      %p167 = por %p165, %p166
      %p168 = scmp.ne.s32.totalorder %s160, %s163
      %p169 = scmp.eq.s32.totalorder %s19, 0
      %p170 = por %p168, %p169
      %p171 = scmp.ne.s32.totalorder %s160, %s163
      %p172 = scmp.eq.s32.totalorder %s24, 3
      %p173 = por %p171, %p172
      %p174 = scmp.ne.s32.totalorder %s163, %s164
      %p175 = scmp.eq.s32.totalorder %s24, 0
      %p176 = por %p174, %p175
      %p177 = scmp.ne.s32.totalorder %s163, %s164
      %p178 = scmp.eq.s32.totalorder %s25, 3
      %p179 = por %p177, %p178
      %p181 = scmp.ne.s32.totalorder %s164, %s180
      %p182 = scmp.eq.s32.totalorder %s25, 0
      %p183 = por %p181, %p182
      %p184 = scmp.le.s32.totalorder 1, %s19
      %p185 = scmp.lt.s32.totalorder %s19, 5
      %p186 = pnand %p184, %p185
      %p187 = pneg %p186
      // Predicated region
      $region9: #{simple_evaluation_loss.1} parent=5 // pred_check
        _
      $region10: #{simple_evaluation_loss.1} parent=5 // pred_check_branch
        %189 = sbr.rel (%p186) target = $region12
      $region11: #{simple_evaluation_loss.1} parent=5 // pred_region
        %s190 = ssub.s32 %s19, 1
        // Predicated region
        $region13: #{simple_evaluation_loss.1} parent=11 // pred_check
          %p191 = pneg %p66
        $region14: #{simple_evaluation_loss.1} parent=11 // pred_check_branch
          %193 = sbr.rel (%p191) target = $region16
        $region15: #{simple_evaluation_loss.1} parent=11 // pred_region
          _
        $region16: #{simple_evaluation_loss.1} parent=11 // pred_fallthru
          _
        // Predicated region
        $region17: #{simple_evaluation_loss.1} parent=11 // pred_check
          %p194 = pneg %p87
        $region18: #{simple_evaluation_loss.1} parent=11 // pred_check_branch
          %196 = sbr.rel (%p194) target = $region20
        $region19: #{simple_evaluation_loss.1} parent=11 // pred_region
          _
        $region20: #{simple_evaluation_loss.1} parent=11 // pred_fallthru
          _
        // Predicated region
        $region21: #{simple_evaluation_loss.1} parent=11 // pred_check
          %p197 = pneg %p108
        $region22: #{simple_evaluation_loss.1} parent=11 // pred_check_branch
          %199 = sbr.rel (%p197) target = $region24
        $region23: #{simple_evaluation_loss.1} parent=11 // pred_region
          _
        $region24: #{simple_evaluation_loss.1} parent=11 // pred_fallthru
          _
        // Predicated region
        $region25: #{simple_evaluation_loss.1} parent=11 // pred_check
          %p200 = pneg %p129
        $region26: #{simple_evaluation_loss.1} parent=11 // pred_check_branch
          %202 = sbr.rel (%p200) target = $region28
        $region27: #{simple_evaluation_loss.1} parent=11 // pred_region
          _
        $region28: #{simple_evaluation_loss.1} parent=11 // pred_fallthru
          _
      $region12: #{simple_evaluation_loss.1} parent=5 // pred_fallthru
        _
      %p203 = scmp.lt.s32.totalorder %s19, 4
      // Predicated region
      $region29: #{simple_evaluation_loss.1} parent=5 // pred_check
        %p204 = pneg %p203
      $region30: #{simple_evaluation_loss.1} parent=5 // pred_check_branch
        %206 = sbr.rel (%p204) target = $region32
      $region31: #{simple_evaluation_loss.1} parent=5 // pred_region
        // Predicated region
        $region33: #{simple_evaluation_loss.1} parent=31 // pred_check
          %p207 = pneg %p39
        $region34: #{simple_evaluation_loss.1} parent=31 // pred_check_branch
          %209 = sbr.rel (%p207) target = $region36
        $region35: #{simple_evaluation_loss.1} parent=31 // pred_region
          %s210 = smul.u32 16, %s19
          %p211 = scmp.lt.s32.totalorder %s210, 63
          %s212 = scalar_select %p211, %s210, 63
          %s213 = smul.addr %s212, 4
          %s214 = scalar_lea.vmem %s1, %s213
          %s215 = smul.u32 16, %s19
        $region36: #{simple_evaluation_loss.1} parent=31 // pred_fallthru
          _
      $region32: #{simple_evaluation_loss.1} parent=5 // pred_fallthru
        _
      %p216 = scmp.le.s32.totalorder 1, %s19
      %p217 = scmp.lt.s32.totalorder %s19, 5
      %p218 = pnand %p216, %p217
      %p219 = pneg %p218
      // Predicated region
      $region37: #{simple_evaluation_loss.1} parent=5 // pred_check
        _
      $region38: #{simple_evaluation_loss.1} parent=5 // pred_check_branch
        %221 = sbr.rel (%p218) target = $region40
      $region39: #{simple_evaluation_loss.1} parent=5 // pred_region
        %s222 = ssub.s32 %s19, 1
        %s223 = smul.u32 16, %s24
        %p224 = scmp.lt.s32.totalorder %s223, 63
        %s225 = scalar_select %p224, %s223, 63
        %s226 = smul.addr %s225, 4
        %s227 = scalar_lea.vmem %s1, %s226
        %p228 = pneg %p45
        %p229 = pneg %p42
        %p230 = pneg %p66
        %p231 = pneg %p63
        %p232 = pneg %p87
        %p233 = pneg %p84
        %p234 = pneg %p108
        %p235 = pneg %p105
        %p236 = pneg %p129
        %p237 = pneg %p126
        %p238 = pneg %p150
        %p239 = pneg %p147
        %p240 = pneg %p176
        %p241 = pneg %p173
        %s242 = sand.u32 %s163, 1
        %s243 = scalar_lea.sflag [#allocation11], %s242
        %s244 = sand.u32 %s163, 1
        %s245 = smul.addr %s244, 128
        %s246 = scalar_lea.vmem [#allocation10], %s245
        %s247 = smul.u32 16, %s24
        %p248 = scmp.lt.s32.totalorder %s247, 63
        %s249 = scalar_select %p248, %s247, 63
        %s250 = smul.addr %s249, 4
        %s251 = scalar_lea.vmem %s1, %s250
        %s252 = smul.u32 16, %s24
        %s253 = smul.u32 16, %s24
        %p254 = scmp.eq.s32.totalorder %s24, 0
        // Predicated region
        $region41: #{simple_evaluation_loss.1} parent=39 // pred_check
          %p255 = pneg %p254
        $region42: #{simple_evaluation_loss.1} parent=39 // pred_check_branch
          %257 = sbr.rel (%p255) target = $region44
        $region43: #{simple_evaluation_loss.1} parent=39 // pred_region
          %v258 = vld [vmem:[%s5] sm:$0x1]
          %v259 = vpack.c.bf16 %v258, %v258
          %v260 = vld [vmem:[%s3] sm:$0xf]
          %v261 = vld [vmem:[%s3 + $0x4] sm:$0xf]
          %v262 = vld [vmem:[%s3 + $0x8] sm:$0xf]
          %v263 = vld [vmem:[%s3 + $0xc] sm:$0xf]
          %v264 = vld [vmem:[%s3 + $0x10] sm:$0xf]
          %v265 = vld [vmem:[%s3 + $0x14] sm:$0xf]
          %v266 = vld [vmem:[%s3 + $0x18] sm:$0xf]
          %v267 = vld [vmem:[%s3 + $0x1c] sm:$0xf]
          %v268 = vld [vmem:[%s3 + $0x20] sm:$0xf]
          %v269 = vld [vmem:[%s3 + $0x24] sm:$0xf]
          %v270 = vld [vmem:[%s3 + $0x28] sm:$0xf]
          %v271 = vld [vmem:[%s3 + $0x2c] sm:$0xf]
          %v272 = vld [vmem:[%s3 + $0x30] sm:$0xf]
          %v273 = vld [vmem:[%s3 + $0x34] sm:$0xf]
          %v274 = vld [vmem:[%s3 + $0x38] sm:$0xf]
          %v275 = vld [vmem:[%s3 + $0x3c] sm:$0xf]
          %v276 = vld [vmem:[%s4] sm:$0x1]
          %v293 = vunpack.c.l.b16 %v260
          %v294 = vunpack.c.l.b16 %v261
          %v295 = vunpack.c.l.b16 %v262
          %v296 = vunpack.c.l.b16 %v263
          %v297 = vunpack.c.l.b16 %v264
          %v298 = vunpack.c.l.b16 %v265
          %v299 = vunpack.c.l.b16 %v266
          %v300 = vunpack.c.l.b16 %v267
          %v301 = vunpack.c.l.b16 %v268
          %v302 = vunpack.c.l.b16 %v269
          %v303 = vunpack.c.l.b16 %v270
          %v304 = vunpack.c.l.b16 %v271
          %v305 = vunpack.c.l.b16 %v272
          %v306 = vunpack.c.l.b16 %v273
          %v307 = vunpack.c.l.b16 %v274
          %v308 = vunpack.c.l.b16 %v275
          %v309 = vpack.c.b16 %v294, %v293
          %v310 = vpack.c.b16 %v296, %v295
          %v311 = vpack.c.b16 %v298, %v297
          %v312 = vpack.c.b16 %v300, %v299
          %v313 = vpack.c.b16 %v302, %v301
          %v314 = vpack.c.b16 %v304, %v303
          %v315 = vpack.c.b16 %v306, %v305
          %v316 = vpack.c.b16 %v308, %v307
          %325 = vmatpush.bf16.msra.mxu0 %v316
          %326 = vmatpush.bf16.msra.mxu0 %v315
          %327 = vmatpush.bf16.msra.mxu0 %v314
          %328 = vmatpush.bf16.msra.mxu0 %v313
          %329 = vmatpush.bf16.msra.mxu0 %v312
          %330 = vmatpush.bf16.msra.mxu0 %v311
          %331 = vmatpush.bf16.msra.mxu0 %v310
          %332 = vmatpush.bf16.msra.mxu0 %v309
          %333 = vmatmul.bf16.gmra.mxu0 %v259
          %v334 = vpop.f32.mrf.mxu0
          %v335 = vadd.f32 %v276, %v334
          %v336 = vpop.f32.mrf.mxu0
          %337 = vdwg.mxu0
          %338 = vst [vmem:[#allocation2] sm:$0x1] %v335
          %vm339 = vcmask 0
          %340 = vst.msk [vmem:[#allocation3] sm:$0x1] %vm339, -inf
          %341 = vst.msk [vmem:[#allocation4] sm:$0x1] %vm339, 0.0
          %342 = vst.msk [vmem:[#allocation5] sm:$0x1] %vm339, 0.0
        $region44: #{simple_evaluation_loss.1} parent=39 // pred_fallthru
          _
        %v343 = vld [vmem:[%s251] sm:$0xf]
        %v344 = vld [vmem:[%s251 + $0x4] sm:$0xf]
        %v345 = vld [vmem:[%s251 + $0x8] sm:$0xf]
        %v346 = vld [vmem:[%s251 + $0xc] sm:$0xf]
        %v347 = vld [vmem:[%s251 + $0x10] sm:$0xf]
        %v348 = vld [vmem:[%s251 + $0x14] sm:$0xf]
        %v349 = vld [vmem:[%s251 + $0x18] sm:$0xf]
        %v350 = vld [vmem:[%s251 + $0x1c] sm:$0xf]
        %v351 = vld [vmem:[%s251 + $0x20] sm:$0xf]
        %v352 = vld [vmem:[%s251 + $0x24] sm:$0xf]
        %v353 = vld [vmem:[%s251 + $0x28] sm:$0xf]
        %v354 = vld [vmem:[%s251 + $0x2c] sm:$0xf]
        %v355 = vld [vmem:[%s251 + $0x30] sm:$0xf]
        %v356 = vld [vmem:[%s251 + $0x34] sm:$0xf]
        %v357 = vld [vmem:[%s251 + $0x38] sm:$0xf]
        %v358 = vld [vmem:[%s251 + $0x3c] sm:$0xf]
        %v359 = vld [vmem:[%s2] sm:$0xf]
        %v360 = vld [vmem:[%s2 + $0x4] sm:$0xf]
        %v361 = vld [vmem:[%s2 + $0x8] sm:$0xf]
        %v362 = vld [vmem:[%s2 + $0xc] sm:$0xf]
        %v363 = vld [vmem:[%s2 + $0x10] sm:$0xf]
        %v364 = vld [vmem:[%s2 + $0x14] sm:$0xf]
        %v365 = vld [vmem:[%s2 + $0x18] sm:$0xf]
        %v366 = vld [vmem:[%s2 + $0x1c] sm:$0xf]
        %v367 = vld [vmem:[%s2 + $0x20] sm:$0xf]
        %v368 = vld [vmem:[%s2 + $0x24] sm:$0xf]
        %v369 = vld [vmem:[%s2 + $0x28] sm:$0xf]
        %v370 = vld [vmem:[%s2 + $0x2c] sm:$0xf]
        %v371 = vld [vmem:[%s2 + $0x30] sm:$0xf]
        %v372 = vld [vmem:[%s2 + $0x34] sm:$0xf]
        %v373 = vld [vmem:[%s2 + $0x38] sm:$0xf]
        %v374 = vld [vmem:[%s2 + $0x3c] sm:$0xf]
        %v375 = vld [vmem:[#allocation2] sm:$0x1]
        %v377 = vperm.slane %v375, 0
        %v395 = vunpack.c.l.b16 %v343
        %v396 = vunpack.c.l.b16 %v344
        %v397 = vunpack.c.l.b16 %v345
        %v398 = vunpack.c.l.b16 %v346
        %v399 = vunpack.c.l.b16 %v347
        %v400 = vunpack.c.l.b16 %v348
        %v401 = vunpack.c.l.b16 %v349
        %v402 = vunpack.c.l.b16 %v350
        %v403 = vunpack.c.l.b16 %v351
        %v404 = vunpack.c.l.b16 %v352
        %v405 = vunpack.c.l.b16 %v353
        %v406 = vunpack.c.l.b16 %v354
        %v407 = vunpack.c.l.b16 %v355
        %v408 = vunpack.c.l.b16 %v356
        %v409 = vunpack.c.l.b16 %v357
        %v410 = vunpack.c.l.b16 %v358
        %v411 = vpack.c.b16 %v396, %v395
        %v412 = vpack.c.b16 %v398, %v397
        %v413 = vpack.c.b16 %v400, %v399
        %v414 = vpack.c.b16 %v402, %v401
        %v415 = vpack.c.b16 %v404, %v403
        %v416 = vpack.c.b16 %v406, %v405
        %v417 = vpack.c.b16 %v408, %v407
        %v418 = vpack.c.b16 %v410, %v409
        %v443 = vunpack.c.l.b16 %v359
        %v444 = vunpack.c.l.b16 %v360
        %v445 = vunpack.c.l.b16 %v361
        %v446 = vunpack.c.l.b16 %v362
        %v447 = vunpack.c.l.b16 %v363
        %v448 = vunpack.c.l.b16 %v364
        %v449 = vunpack.c.l.b16 %v365
        %v450 = vunpack.c.l.b16 %v366
        %v451 = vunpack.c.l.b16 %v367
        %v452 = vunpack.c.l.b16 %v368
        %v453 = vunpack.c.l.b16 %v369
        %v454 = vunpack.c.l.b16 %v370
        %v455 = vunpack.c.l.b16 %v371
        %v456 = vunpack.c.l.b16 %v372
        %v457 = vunpack.c.l.b16 %v373
        %v458 = vunpack.c.l.b16 %v374
        %v459 = vpack.c.b16 %v444, %v443
        %v460 = vpack.c.b16 %v446, %v445
        %v461 = vpack.c.b16 %v448, %v447
        %v462 = vpack.c.b16 %v450, %v449
        %v463 = vpack.c.b16 %v452, %v451
        %v464 = vpack.c.b16 %v454, %v453
        %v465 = vpack.c.b16 %v456, %v455
        %v466 = vpack.c.b16 %v458, %v457
        %475 = vmatpush.bf16.msra.mxu0 %v466
        %476 = vmatpush.bf16.msra.mxu0 %v465
        %477 = vmatpush.bf16.msra.mxu0 %v464
        %478 = vmatpush.bf16.msra.mxu0 %v463
        %479 = vmatpush.bf16.msra.mxu0 %v462
        %480 = vmatpush.bf16.msra.mxu0 %v461
        %481 = vmatpush.bf16.msra.mxu0 %v460
        %482 = vmatpush.bf16.msra.mxu0 %v459
        %483 = vmatmul.bf16.gmra.mxu0 %v411
        %v484 = vpop.f32.mrf.mxu0
        %v485 = vadd.f32 %v377, %v484
        %v486 = vpop.f32.mrf.mxu0
        %v487 = vadd.f32 %v377, %v486
        %488 = vmatmul.bf16.gmra.mxu0 %v412
        %v489 = vpop.f32.mrf.mxu0
        %v490 = vadd.f32 %v377, %v489
        %v491 = vpop.f32.mrf.mxu0
        %v492 = vadd.f32 %v377, %v491
        %493 = vmatmul.bf16.gmra.mxu0 %v413
        %v494 = vpop.f32.mrf.mxu0
        %v495 = vadd.f32 %v377, %v494
        %v496 = vpop.f32.mrf.mxu0
        %v497 = vadd.f32 %v377, %v496
        %498 = vmatmul.bf16.gmra.mxu0 %v414
        %v499 = vpop.f32.mrf.mxu0
        %v500 = vadd.f32 %v377, %v499
        %v501 = vpop.f32.mrf.mxu0
        %v502 = vadd.f32 %v377, %v501
        %503 = vmatmul.bf16.gmra.mxu0 %v415
        %v504 = vpop.f32.mrf.mxu0
        %v505 = vadd.f32 %v377, %v504
        %v506 = vpop.f32.mrf.mxu0
        %v507 = vadd.f32 %v377, %v506
        %508 = vmatmul.bf16.gmra.mxu0 %v416
        %v509 = vpop.f32.mrf.mxu0
        %v510 = vadd.f32 %v377, %v509
        %v511 = vpop.f32.mrf.mxu0
        %v512 = vadd.f32 %v377, %v511
        %513 = vmatmul.bf16.gmra.mxu0 %v417
        %v514 = vpop.f32.mrf.mxu0
        %v515 = vadd.f32 %v377, %v514
        %v516 = vpop.f32.mrf.mxu0
        %v517 = vadd.f32 %v377, %v516
        %518 = vmatmul.bf16.gmra.mxu0 %v418
        %v519 = vpop.f32.mrf.mxu0
        %v520 = vadd.f32 %v377, %v519
        %v521 = vpop.f32.mrf.mxu0
        %v522 = vadd.f32 %v377, %v521
        %523 = vdwg.mxu0
        %v524 = vtanh.pop %v485
        %v525 = vtanh.pop %v487
        %v526 = vtanh.pop %v490
        %v527 = vtanh.pop %v492
        %v528 = vtanh.pop %v495
        %v529 = vtanh.pop %v497
        %v530 = vtanh.pop %v500
        %v531 = vtanh.pop %v502
        %v532 = vtanh.pop %v505
        %v533 = vtanh.pop %v507
        %v534 = vtanh.pop %v510
        %v535 = vtanh.pop %v512
        %v536 = vtanh.pop %v515
        %v537 = vtanh.pop %v517
        %v538 = vtanh.pop %v520
        %v539 = vtanh.pop %v522
        %540 = vst [vmem:[%s246] sm:$0xff] %v524
        %541 = vst [vmem:[%s246 + $0x8] sm:$0xff] %v525
        %542 = vst [vmem:[%s246 + $0x10] sm:$0xff] %v526
        %543 = vst [vmem:[%s246 + $0x18] sm:$0xff] %v527
        %544 = vst [vmem:[%s246 + $0x20] sm:$0xff] %v528
        %545 = vst [vmem:[%s246 + $0x28] sm:$0xff] %v529
        %546 = vst [vmem:[%s246 + $0x30] sm:$0xff] %v530
        %547 = vst [vmem:[%s246 + $0x38] sm:$0xff] %v531
        %548 = vst [vmem:[%s246 + $0x40] sm:$0xff] %v532
        %549 = vst [vmem:[%s246 + $0x48] sm:$0xff] %v533
        %550 = vst [vmem:[%s246 + $0x50] sm:$0xff] %v534
        %551 = vst [vmem:[%s246 + $0x58] sm:$0xff] %v535
        %552 = vst [vmem:[%s246 + $0x60] sm:$0xff] %v536
        %553 = vst [vmem:[%s246 + $0x68] sm:$0xff] %v537
        %554 = vst [vmem:[%s246 + $0x70] sm:$0xff] %v538
        %555 = vst [vmem:[%s246 + $0x78] sm:$0xff] %v539
        %v556 = vld [vmem:[%s5] sm:$0x1]
        %v558 = vperm.slane %v556, 0
        %v560 = vsub.f32 %v558, %v524
        %v561 = vsub.f32 %v558, %v525
        %v562 = vsub.f32 %v558, %v526
        %v563 = vsub.f32 %v558, %v527
        %v564 = vsub.f32 %v558, %v528
        %v565 = vsub.f32 %v558, %v529
        %v566 = vsub.f32 %v558, %v530
        %v567 = vsub.f32 %v558, %v531
        %v568 = vsub.f32 %v558, %v532
        %v569 = vsub.f32 %v558, %v533
        %v570 = vsub.f32 %v558, %v534
        %v571 = vsub.f32 %v558, %v535
        %v572 = vsub.f32 %v558, %v536
        %v573 = vsub.f32 %v558, %v537
        %v574 = vsub.f32 %v558, %v538
        %v575 = vsub.f32 %v558, %v539
        %v576 = vadd.f32 %v560, 1e-06
        %v577 = vadd.f32 %v561, 1e-06
        %v578 = vadd.f32 %v562, 1e-06
        %v579 = vadd.f32 %v563, 1e-06
        %v580 = vadd.f32 %v564, 1e-06
        %v581 = vadd.f32 %v565, 1e-06
        %v582 = vadd.f32 %v566, 1e-06
        %v583 = vadd.f32 %v567, 1e-06
        %v584 = vadd.f32 %v568, 1e-06
        %v585 = vadd.f32 %v569, 1e-06
        %v586 = vadd.f32 %v570, 1e-06
        %v587 = vadd.f32 %v571, 1e-06
        %v588 = vadd.f32 %v572, 1e-06
        %v589 = vadd.f32 %v573, 1e-06
        %v590 = vadd.f32 %v574, 1e-06
        %v591 = vadd.f32 %v575, 1e-06
        %v592 = vmul.f32 %v576, %v576
        %v593 = vmul.f32 %v577, %v577
        %v594 = vmul.f32 %v578, %v578
        %v595 = vmul.f32 %v579, %v579
        %v596 = vmul.f32 %v580, %v580
        %v597 = vmul.f32 %v581, %v581
        %v598 = vmul.f32 %v582, %v582
        %v599 = vmul.f32 %v583, %v583
        %v600 = vmul.f32 %v584, %v584
        %v601 = vmul.f32 %v585, %v585
        %v602 = vmul.f32 %v586, %v586
        %v603 = vmul.f32 %v587, %v587
        %v604 = vmul.f32 %v588, %v588
        %v605 = vmul.f32 %v589, %v589
        %v606 = vmul.f32 %v590, %v590
        %v607 = vmul.f32 %v591, %v591
        %608 = vadd.xlane.f32.xlu0 %v592
        %v609 = vpop.xlane.xlu0 %608
        %610 = vadd.xlane.f32.xlu0 %v593
        %v611 = vpop.xlane.xlu0 %610
        %612 = vadd.xlane.f32.xlu0 %v594
        %v613 = vpop.xlane.xlu0 %612
        %614 = vadd.xlane.f32.xlu0 %v595
        %v615 = vpop.xlane.xlu0 %614
        %616 = vadd.xlane.f32.xlu0 %v596
        %v617 = vpop.xlane.xlu0 %616
        %618 = vadd.xlane.f32.xlu0 %v597
        %v619 = vpop.xlane.xlu0 %618
        %620 = vadd.xlane.f32.xlu0 %v598
        %v621 = vpop.xlane.xlu0 %620
        %622 = vadd.xlane.f32.xlu0 %v599
        %v623 = vpop.xlane.xlu0 %622
        %624 = vadd.xlane.f32.xlu0 %v600
        %v625 = vpop.xlane.xlu0 %624
        %626 = vadd.xlane.f32.xlu0 %v601
        %v627 = vpop.xlane.xlu0 %626
        %628 = vadd.xlane.f32.xlu0 %v602
        %v629 = vpop.xlane.xlu0 %628
        %630 = vadd.xlane.f32.xlu0 %v603
        %v631 = vpop.xlane.xlu0 %630
        %632 = vadd.xlane.f32.xlu0 %v604
        %v633 = vpop.xlane.xlu0 %632
        %634 = vadd.xlane.f32.xlu0 %v605
        %v635 = vpop.xlane.xlu0 %634
        %636 = vadd.xlane.f32.xlu0 %v606
        %v637 = vpop.xlane.xlu0 %636
        %638 = vadd.xlane.f32.xlu0 %v607
        %v639 = vpop.xlane.xlu0 %638
        %v640 = vmul.f32 %v609, -0.5
        %v641 = vmul.f32 %v611, -0.5
        %v642 = vmul.f32 %v613, -0.5
        %v643 = vmul.f32 %v615, -0.5
        %v644 = vmul.f32 %v617, -0.5
        %v645 = vmul.f32 %v619, -0.5
        %v646 = vmul.f32 %v621, -0.5
        %v647 = vmul.f32 %v623, -0.5
        %v648 = vmul.f32 %v625, -0.5
        %v649 = vmul.f32 %v627, -0.5
        %v650 = vmul.f32 %v629, -0.5
        %v651 = vmul.f32 %v631, -0.5
        %v652 = vmul.f32 %v633, -0.5
        %v653 = vmul.f32 %v635, -0.5
        %v654 = vmul.f32 %v637, -0.5
        %v655 = vmul.f32 %v639, -0.5
        %v656 = vmax.f32 %v640, %v644
        %v657 = vmax.f32 %v641, %v645
        %v658 = vmax.f32 %v642, %v646
        %v659 = vmax.f32 %v643, %v647
        %v660 = vmax.f32 %v656, %v648
        %v661 = vmax.f32 %v657, %v649
        %v662 = vmax.f32 %v658, %v650
        %v663 = vmax.f32 %v659, %v651
        %v664 = vmax.f32 %v660, %v652
        %v665 = vmax.f32 %v661, %v653
        %v666 = vmax.f32 %v662, %v654
        %v667 = vmax.f32 %v663, %v655
        %v668 = vmax.f32 %v664, %v665
        %v669 = vmax.f32 %v666, %v667
        %v670 = vmax.f32 %v668, %v669
        %v671 = vrot.slane %v670, 4
        %v672 = vmax.f32 %v670, %v671
        %v673 = vrot.slane %v672, 2
        %v674 = vmax.f32 %v672, %v673
        %v675 = vrot.slane %v674, 1
        %v676 = vmax.f32 %v674, %v675
        %v677 = vld [vmem:[#allocation3] sm:$0x1]
        %v678 = vmax.f32 %v677, %v676
        %v679 = vld [vmem:[#allocation4] sm:$0x1]
        %v680 = vsub.f32 %v677, %v678
        %v681 = vmul.f32 %v680, 1.442695
        %v682 = vpow.pop %v681
        %v683 = vmul.f32 %v679, %v682
        %v685 = vperm.slane %v678, 0
        %v687 = vsub.f32 %v640, %v685
        %v688 = vsub.f32 %v641, %v685
        %v689 = vsub.f32 %v642, %v685
        %v690 = vsub.f32 %v643, %v685
        %v691 = vsub.f32 %v644, %v685
        %v692 = vsub.f32 %v645, %v685
        %v693 = vsub.f32 %v646, %v685
        %v694 = vsub.f32 %v647, %v685
        %v695 = vsub.f32 %v648, %v685
        %v696 = vsub.f32 %v649, %v685
        %v697 = vsub.f32 %v650, %v685
        %v698 = vsub.f32 %v651, %v685
        %v699 = vsub.f32 %v652, %v685
        %v700 = vsub.f32 %v653, %v685
        %v701 = vsub.f32 %v654, %v685
        %v702 = vsub.f32 %v655, %v685
        %v703 = vmul.f32 %v687, 1.442695
        %v704 = vpow.pop %v703
        %v705 = vmul.f32 %v688, 1.442695
        %v706 = vpow.pop %v705
        %v707 = vmul.f32 %v689, 1.442695
        %v708 = vpow.pop %v707
        %v709 = vmul.f32 %v690, 1.442695
        %v710 = vpow.pop %v709
        %v711 = vmul.f32 %v691, 1.442695
        %v712 = vpow.pop %v711
        %v713 = vmul.f32 %v692, 1.442695
        %v714 = vpow.pop %v713
        %v715 = vmul.f32 %v693, 1.442695
        %v716 = vpow.pop %v715
        %v717 = vmul.f32 %v694, 1.442695
        %v718 = vpow.pop %v717
        %v719 = vmul.f32 %v695, 1.442695
        %v720 = vpow.pop %v719
        %v721 = vmul.f32 %v696, 1.442695
        %v722 = vpow.pop %v721
        %v723 = vmul.f32 %v697, 1.442695
        %v724 = vpow.pop %v723
        %v725 = vmul.f32 %v698, 1.442695
        %v726 = vpow.pop %v725
        %v727 = vmul.f32 %v699, 1.442695
        %v728 = vpow.pop %v727
        %v729 = vmul.f32 %v700, 1.442695
        %v730 = vpow.pop %v729
        %v731 = vmul.f32 %v701, 1.442695
        %v732 = vpow.pop %v731
        %v733 = vmul.f32 %v702, 1.442695
        %v734 = vpow.pop %v733
        %vm735 = vcmask 7168
        %v736 = vsel %vm735, %v704, 0.0
        %v737 = vsel %vm735, %v706, 0.0
        %v738 = vadd.f32 %v736, %v737
        %v739 = vsel %vm735, %v708, 0.0
        %v740 = vadd.f32 %v738, %v739
        %v741 = vsel %vm735, %v710, 0.0
        %v742 = vadd.f32 %v740, %v741
        %v743 = vsel %vm735, %v712, 0.0
        %v744 = vadd.f32 %v742, %v743
        %v745 = vsel %vm735, %v714, 0.0
        %v746 = vadd.f32 %v744, %v745
        %v747 = vsel %vm735, %v716, 0.0
        %v748 = vadd.f32 %v746, %v747
        %v749 = vsel %vm735, %v718, 0.0
        %v750 = vadd.f32 %v748, %v749
        %v751 = vsel %vm735, %v720, 0.0
        %v752 = vadd.f32 %v750, %v751
        %v753 = vsel %vm735, %v722, 0.0
        %v754 = vadd.f32 %v752, %v753
        %v755 = vsel %vm735, %v724, 0.0
        %v756 = vadd.f32 %v754, %v755
        %v757 = vsel %vm735, %v726, 0.0
        %v758 = vadd.f32 %v756, %v757
        %v759 = vsel %vm735, %v728, 0.0
        %v760 = vadd.f32 %v758, %v759
        %v761 = vsel %vm735, %v730, 0.0
        %v762 = vadd.f32 %v760, %v761
        %v763 = vsel %vm735, %v732, 0.0
        %v764 = vadd.f32 %v762, %v763
        %v765 = vsel %vm735, %v734, 0.0
        %v766 = vadd.f32 %v764, %v765
        %v767 = vrot.slane %v766, 4
        %v768 = vadd.f32 %v766, %v767
        %v769 = vrot.slane %v768, 2
        %v770 = vadd.f32 %v768, %v769
        %v771 = vrot.slane %v770, 1
        %v772 = vadd.f32 %v770, %v771
        %v773 = vadd.f32 %v683, %v772
        %vm774 = vcmask 0
        %775 = vst.msk [vmem:[#allocation4] sm:$0x1] %vm774, %v773
        %776 = vst.msk [vmem:[#allocation3] sm:$0x1] %vm774, %v678
        %s777 = sld [smem:[#allocation7]]
        %s778 = smul.u32 %s24, 128
        %p779 = scmp.ge.s32.totalorder %s777, %s778
        %s780 = sadd.s32 %s778, 128
        %p781 = scmp.lt.s32.totalorder %s777, %s780
        %p782 = pnand %p779, %p781
        %p783 = pneg %p782
        // Predicated region
        $region45: #{simple_evaluation_loss.1} parent=39 // pred_check
          _
        $region46: #{simple_evaluation_loss.1} parent=39 // pred_check_branch
          %785 = sbr.rel (%p782) target = $region48
        $region47: #{simple_evaluation_loss.1} parent=39 // pred_region
          %v786 = vlaneseq
          %v787 = vshrl.u32 %v786, 7
          %v788 = vadd.s32 %v787, 8
          %v789 = vadd.s32 %v787, 16
          %v790 = vadd.s32 %v787, 24
          %v791 = vadd.s32 %v787, 32
          %v792 = vadd.s32 %v787, 40
          %v793 = vadd.s32 %v787, 48
          %v794 = vadd.s32 %v787, 56
          %v795 = vadd.s32 %v787, 64
          %v796 = vadd.s32 %v787, 72
          %v797 = vadd.s32 %v787, 80
          %v798 = vadd.s32 %v787, 88
          %v799 = vadd.s32 %v787, 96
          %v800 = vadd.s32 %v787, 104
          %v801 = vadd.s32 %v787, 112
          %v802 = vadd.s32 %v787, 120
          %s803 = ssub.s32 %s777, %s778
          %v804 = vstv %s803
          %vm805 = vcmp.eq.s32.totalorder %v787, %v804
          %vm806 = vcmp.eq.s32.totalorder %v788, %v804
          %vm807 = vcmp.eq.s32.totalorder %v789, %v804
          %vm808 = vcmp.eq.s32.totalorder %v790, %v804
          %vm809 = vcmp.eq.s32.totalorder %v791, %v804
          %vm810 = vcmp.eq.s32.totalorder %v792, %v804
          %vm811 = vcmp.eq.s32.totalorder %v793, %v804
          %vm812 = vcmp.eq.s32.totalorder %v794, %v804
          %vm813 = vcmp.eq.s32.totalorder %v795, %v804
          %vm814 = vcmp.eq.s32.totalorder %v796, %v804
          %vm815 = vcmp.eq.s32.totalorder %v797, %v804
          %vm816 = vcmp.eq.s32.totalorder %v798, %v804
          %vm817 = vcmp.eq.s32.totalorder %v799, %v804
          %vm818 = vcmp.eq.s32.totalorder %v800, %v804
          %vm819 = vcmp.eq.s32.totalorder %v801, %v804
          %vm820 = vcmp.eq.s32.totalorder %v802, %v804
          %v821 = vsel %vm805, %v640, 0.0
          %v822 = vsel %vm806, %v641, 0.0
          %v823 = vsel %vm807, %v642, 0.0
          %v824 = vsel %vm808, %v643, 0.0
          %v825 = vsel %vm809, %v644, 0.0
          %v826 = vsel %vm810, %v645, 0.0
          %v827 = vsel %vm811, %v646, 0.0
          %v828 = vsel %vm812, %v647, 0.0
          %v829 = vsel %vm813, %v648, 0.0
          %v830 = vsel %vm814, %v649, 0.0
          %v831 = vsel %vm815, %v650, 0.0
          %v832 = vsel %vm816, %v651, 0.0
          %v833 = vsel %vm817, %v652, 0.0
          %v834 = vsel %vm818, %v653, 0.0
          %v835 = vsel %vm819, %v654, 0.0
          %v836 = vsel %vm820, %v655, 0.0
          %v837 = vadd.f32 %v821, %v822
          %v838 = vadd.f32 %v837, %v823
          %v839 = vadd.f32 %v838, %v824
          %v840 = vadd.f32 %v839, %v825
          %v841 = vadd.f32 %v840, %v826
          %v842 = vadd.f32 %v841, %v827
          %v843 = vadd.f32 %v842, %v828
          %v844 = vadd.f32 %v843, %v829
          %v845 = vadd.f32 %v844, %v830
          %v846 = vadd.f32 %v845, %v831
          %v847 = vadd.f32 %v846, %v832
          %v848 = vadd.f32 %v847, %v833
          %v849 = vadd.f32 %v848, %v834
          %v850 = vadd.f32 %v849, %v835
          %v851 = vadd.f32 %v850, %v836
          %v852 = vrot.slane %v851, 4
          %v853 = vadd.f32 %v851, %v852
          %v854 = vrot.slane %v853, 2
          %v855 = vadd.f32 %v853, %v854
          %v856 = vrot.slane %v855, 1
          %v857 = vadd.f32 %v855, %v856
          %858 = vst.msk [vmem:[#allocation5] sm:$0x1] %vm774, %v857
        $region48: #{simple_evaluation_loss.1} parent=39 // pred_fallthru
          _
        %p859 = scmp.eq.s32.totalorder %s24, 3
        // Predicated region
        $region49: #{simple_evaluation_loss.1} parent=39 // pred_check
          %p860 = pneg %p859
        $region50: #{simple_evaluation_loss.1} parent=39 // pred_check_branch
          %862 = sbr.rel (%p860) target = $region52
        $region51: #{simple_evaluation_loss.1} parent=39 // pred_region
          %v863 = vld [vmem:[#allocation3] sm:$0x1]
          %v864 = vld [vmem:[#allocation4] sm:$0x1]
          %v865 = vlog2.pop %v864
          %v866 = vmul.f32 %v865, 0.6931472
          %v867 = vadd.f32 %v863, %v866
          %v868 = vld [vmem:[#allocation5] sm:$0x1]
          %v869 = vsub.f32 %v867, %v868
          %870 = vst.msk [vmem:[#allocation8] sm:$0x1] %vm774, %v869
        $region52: #{simple_evaluation_loss.1} parent=39 // pred_fallthru
          _
        %s871 = sand.u32 %s163, 1
        %s872 = scalar_lea.sflag [#allocation11], %s871
        %s873 = sand.u32 %s163, 1
        %s874 = smul.addr %s873, 128
        %s875 = scalar_lea.vmem [#allocation10], %s874
        // Predicated region
        $region53: #{simple_evaluation_loss.1} parent=39 // pred_check
          %p876 = pneg %p147
        $region54: #{simple_evaluation_loss.1} parent=39 // pred_check_branch
          %878 = sbr.rel (%p876) target = $region56
        $region55: #{simple_evaluation_loss.1} parent=39 // pred_region
          %880 = vsyncadd [#allocation9], 0
          %s882 = sshll.u32 [#allocation8], 4
          %s883 = int_to_ptr.vmem [resolvable:$true] %s882
          %s884 = sshll.u32 %s6, 4
          %s885 = int_to_ptr.hbm [resolvable:$true] %s884
          %887 = dma.vmem_to_hbm [thread:$0]  %s883, 16, %s885, [#allocation9]
        $region56: #{simple_evaluation_loss.1} parent=39 // pred_fallthru
          _
        // Predicated region
        $region57: #{simple_evaluation_loss.1} parent=39 // pred_check
          %p888 = pneg %p173
        $region58: #{simple_evaluation_loss.1} parent=39 // pred_check_branch
          %890 = sbr.rel (%p888) target = $region60
        $region59: #{simple_evaluation_loss.1} parent=39 // pred_region
          %s891 = smul.u32 16, %s24
          %893 = vsyncadd %s872, 0
          %s894 = smul.addr %s891, 8
          %s895 = scalar_lea.hbm %s7, %s894
          %s896 = sshll.u32 %s875, 4
          %s897 = int_to_ptr.vmem [resolvable:$true] %s896
          %s898 = sshll.u32 %s895, 4
          %s899 = int_to_ptr.hbm [resolvable:$true] %s898
          %904 = dma.vmem_to_hbm [thread:$0]  %s897, 2048, %s899, %s872, 128, 128, 8
        $region60: #{simple_evaluation_loss.1} parent=39 // pred_fallthru
          _
        // Predicated region
        $region61: #{simple_evaluation_loss.1} parent=39 // pred_check
          %p905 = pneg %p147
        $region62: #{simple_evaluation_loss.1} parent=39 // pred_check_branch
          %907 = sbr.rel (%p905) target = $region64
        $region63: #{simple_evaluation_loss.1} parent=39 // pred_region
          %909 = dma.done [#allocation9], 16
        $region64: #{simple_evaluation_loss.1} parent=39 // pred_fallthru
          _
      $region40: #{simple_evaluation_loss.1} parent=5 // pred_fallthru
        _
      %p910 = scmp.le.s32.totalorder 2, %s19
      // Predicated region
      $region65: #{simple_evaluation_loss.1} parent=5 // pred_check
        %p911 = pneg %p910
      $region66: #{simple_evaluation_loss.1} parent=5 // pred_check_branch
        %913 = sbr.rel (%p911) target = $region68
      $region67: #{simple_evaluation_loss.1} parent=5 // pred_region
        %s914 = ssub.s32 %s19, 2
        // Predicated region
        $region69: #{simple_evaluation_loss.1} parent=67 // pred_check
          %p915 = pneg %p179
        $region70: #{simple_evaluation_loss.1} parent=67 // pred_check_branch
          %917 = sbr.rel (%p915) target = $region72
        $region71: #{simple_evaluation_loss.1} parent=67 // pred_region
          %s918 = sand.u32 %s164, 1
          %s919 = scalar_lea.sflag [#allocation11], %s918
          %s920 = sand.u32 %s164, 1
          %s921 = smul.addr %s920, 128
          %s922 = scalar_lea.vmem [#allocation10], %s921
          %924 = dma.done %s919, 2048
        $region72: #{simple_evaluation_loss.1} parent=67 // pred_fallthru
          _
      $region68: #{simple_evaluation_loss.1} parent=5 // pred_fallthru
        _
    $region6: #{simple_evaluation_loss.1} parent=1 // loop_footer
      %s23 = sadd.s32 1, %s19
    $region7: #{simple_evaluation_loss.1} parent=1 // loop_footer_branch
      %18 = sbr.rel target = $region3
    $region8: #{simple_evaluation_loss.1} parent=1 // loop_exit
      _
    %925 = vsyncpa [#allocation9], 1
    %s926 = scalar_lea.sflag [#allocation9], 1
    %927 = vsyncpa %s926, 1
    %928 = vsyncpa [#allocation11], 1
    %s929 = scalar_lea.sflag [#allocation11], 1
    %930 = vsyncpa %s929, 1

</llo_original>
